<compile_context>
chip_gen: v7x
topology: tpu7x:2x2x1
jax: 0.10.0
libtpu: 0.0.40
codegen_flags: <defaults>
</compile_context>

<pallas_src>
import jax
import jax.numpy as jnp
from jax import lax
from jax.experimental import pallas as pl
from jax.experimental.pallas import tpu as pltpu


def subgraph_fusion_kernel(z2_ref, w1t_ref, b1_ref, w2_ref, out_ref, beta_ref):
    nm = z2_ref.shape[0]          # N * M flattened rows
    n = out_ref.shape[0]          # N
    m = beta_ref.shape[1]         # M

    z2 = z2_ref[...]              # (N*M, D), kept in input dtype

    # ---- projection 1: one dense MXU matmul, f32 accumulation ----
    h = jnp.dot(z2, w1t_ref[...], preferred_element_type=jnp.float32)
    h = jnp.tanh(h + b1_ref[...])                                   # (N*M, H) f32

    # ---- projection 2 (hidden -> 1): VPU multiply + lane reduce ----
    s_col = jnp.sum(h * w2_ref[...], axis=-1, keepdims=True)        # (N*M, 1)

    # ---- group mask with ONE compare: g[r, j] == (r mod M == j) ----
    r_idx = lax.broadcasted_iota(jnp.int32, (nm, m), 0)
    j_idx = lax.broadcasted_iota(jnp.int32, (nm, m), 1)
    if (m & (m - 1)) == 0:
        gid = jnp.bitwise_and(r_idx, m - 1)          # power-of-two M: cheap AND
    else:
        gid = r_idx - (r_idx // m) * m               # general M
    g = gid == j_idx                                                  # (N*M, M)

    # ---- mean over N -> lane-dense (1, M) ----
    wv = jnp.sum(jnp.where(g, s_col, 0.0), axis=0, keepdims=True) * (1.0 / n)

    # ---- softmax over M (lane axis) ----
    wv = wv - jnp.max(wv, axis=-1, keepdims=True)
    e = jnp.exp(wv)
    beta_row = e / jnp.sum(e, axis=-1, keepdims=True)                # (1, M)
    beta_ref[...] = beta_row                                         # lane-dense store

    # ---- beta-weighted sum over M as a single MXU contraction (small-N path) ----
    # per-row weight = beta of that row's subgraph (reuse the group mask g)
    w_rows = jnp.sum(jnp.where(g, beta_row, 0.0), axis=-1, keepdims=True)   # (N*M, 1)
    wz = w_rows.astype(z2.dtype) * z2                                        # (N*M, D)
    i_idx = lax.broadcasted_iota(jnp.int32, (n, nm), 0)
    rr_idx = lax.broadcasted_iota(jnp.int32, (n, nm), 1)
    sel = jnp.logical_and(rr_idx >= i_idx * m, rr_idx < (i_idx + 1) * m)     # (N, N*M)
    out = jnp.dot(sel.astype(wz.dtype), wz, preferred_element_type=jnp.float32)
    out_ref[...] = out.astype(out_ref.dtype)                                 # (N, D)


def subgraph_fusion(z, w1, b1, w2):
    n, m, d = z.shape
    h = w1.shape[0]

    z2d = z.reshape(n * m, d)      # flatten in the wrapper (HBM-level view)
    w1t = w1.T                     # (D, H): kernel matmul is (N*M, D) x (D, H)
    b1r = b1.reshape(1, h)
    w2r = w2.reshape(1, h)

    itemsize = jnp.dtype(z.dtype).itemsize
    cost = pl.CostEstimate(
        flops=2 * n * m * d * h + 3 * n * m * h + 2 * n * (n * m) * d,
        transcendentals=n * m * h + m,
        bytes_accessed=(n * m * d + n * d) * itemsize + (d * h + 2 * h + m) * 4,
    )

    # NOTE: outputs are lane-sparse at these toy sizes (M=4, D=32) -> masked
    # stores; negligible here.  For real D/M >= 128 keep them multiples of 128
    # (or pad the output slab in the wrapper) so the final stores are full-lane.
    out, beta_row = pl.pallas_call(
        subgraph_fusion_kernel,
        out_shape=(
            jax.ShapeDtypeStruct((n, d), z.dtype),          # (beta * z).sum(1)
            jax.ShapeDtypeStruct((1, m), jnp.float32),      # beta, lane-dense
        ),
        in_specs=[pl.BlockSpec(memory_space=pltpu.MemorySpace.VMEM)] * 4,
        out_specs=(
            pl.BlockSpec(memory_space=pltpu.MemorySpace.VMEM),
            pl.BlockSpec(memory_space=pltpu.MemorySpace.VMEM),
        ),
        cost_estimate=cost,
    )(z2d, w1t, b1r, w2r)

    # Module returns beta_ with shape (M, 1).
    return out, beta_row.reshape(m, 1)


def reference(z, w1, b1, w2):
    h = jnp.tanh(jnp.einsum("nmd,hd->nmh", z, w1) + b1)
    s = jnp.einsum("nmh,oh->nmo", h, w2)
    wv = jnp.mean(s, axis=0)                 # (M, 1)
    beta = jax.nn.softmax(wv, axis=0)        # (M, 1)
    out = jnp.sum(beta[None, :, :] * z, axis=1)
    return out, beta


if __name__ == "__main__":
    N, M, D, H = 2, 4, 32, 128  # batch, num_subgraphs, in_size, hidden_size

    key = jax.random.PRNGKey(0)
    kz, k1, k2, k3 = jax.random.split(key, 4)

    z = jax.random.normal(kz, (N, M, D), dtype=jnp.float32)

    # Deterministic Xavier-normal-ish init (gain=1.414), matching module shapes:
    #   Linear(in_size, hidden): weight (H, D), bias (H,)
    #   Linear(hidden, 1, bias=False): weight (1, H)
    gain = 1.414
    std1 = gain * (2.0 / (D + H)) ** 0.5
    std2 = gain * (2.0 / (H + 1)) ** 0.5
    w1 = std1 * jax.random.normal(k1, (H, D), dtype=jnp.float32)
    b1 = 0.01 * jax.random.normal(k2, (H,), dtype=jnp.float32)
    w2 = std2 * jax.random.normal(k3, (1, H), dtype=jnp.float32)

    out, beta = subgraph_fusion(z, w1, b1, w2)
    jax.block_until_ready((out, beta))

    out_ref, beta_ref = reference(z, w1, b1, w2)
    assert jnp.allclose(out, out_ref, atol=1e-5, rtol=1e-5)
    assert jnp.allclose(beta, beta_ref, atol=1e-5, rtol=1e-5)

    print("KERNEL_OK")
</pallas_src>

<mosaic_0001>
module attributes {stable_mosaic.version = 11 : i64} {
  func.func @subgraph_fusion_kernel(%arg0: memref<8x32xf32, #tpu.memory_space<vmem>>, %arg1: memref<32x128xf32, #tpu.memory_space<vmem>>, %arg2: memref<1x128xf32, #tpu.memory_space<vmem>>, %arg3: memref<1x128xf32, #tpu.memory_space<vmem>>, %arg4: memref<2x32xf32, #tpu.memory_space<vmem>>, %arg5: memref<1x4xf32, #tpu.memory_space<vmem>>) attributes {dimension_semantics = [], scalar_prefetch = 0 : i64, scratch_operands = 0 : i64, tpu.core_type = #tpu.core_type<tc>} {
    %c0 = arith.constant 0 : index
    %c0_0 = arith.constant 0 : index
    %0 = vector.load %arg0[%c0, %c0_0] : memref<8x32xf32, #tpu.memory_space<vmem>>, vector<8x32xf32>
    %c0_1 = arith.constant 0 : index
    %c0_2 = arith.constant 0 : index
    %1 = vector.load %arg1[%c0_1, %c0_2] : memref<32x128xf32, #tpu.memory_space<vmem>>, vector<32x128xf32>
    %cst = arith.constant dense<0.000000e+00> : vector<8x128xf32>
    %2 = tpu.matmul %0, %1, %cst {dimension_numbers = #tpu.dot_dimension_numbers<[1], [0], [0], [1], [0, 0, 1, 1], [], []>} : vector<8x32xf32>, vector<32x128xf32>, vector<8x128xf32> -> vector<8x128xf32>
    %c0_3 = arith.constant 0 : index
    %c0_4 = arith.constant 0 : index
    %3 = vector.load %arg2[%c0_3, %c0_4] : memref<1x128xf32, #tpu.memory_space<vmem>>, vector<1x128xf32>
    %4 = vector.broadcast %3 : vector<1x128xf32> to vector<8x128xf32>
    %5 = arith.addf %2, %4 : vector<8x128xf32>
    %6 = math.tanh %5 : vector<8x128xf32>
    %c0_5 = arith.constant 0 : index
    %c0_6 = arith.constant 0 : index
    %7 = vector.load %arg3[%c0_5, %c0_6] : memref<1x128xf32, #tpu.memory_space<vmem>>, vector<1x128xf32>
    %8 = vector.broadcast %7 : vector<1x128xf32> to vector<8x128xf32>
    %9 = arith.mulf %6, %8 : vector<8x128xf32>
    %cst_7 = arith.constant dense<0.000000e+00> : vector<8xf32>
    %10 = vector.multi_reduction <add>, %9, %cst_7 [1] : vector<8x128xf32> to vector<8xf32>
    %11 = vector.shape_cast %10 : vector<8xf32> to vector<8x1xf32>
    %12 = tpu.iota {dimensions = array<i32: 0>} : vector<8x4xi32>
    %13 = tpu.iota {dimensions = array<i32: 1>} : vector<8x4xi32>
    %c3_i32 = arith.constant 3 : i32
    %14 = vector.broadcast %c3_i32 : i32 to vector<8x4xi32>
    %15 = arith.andi %12, %14 : vector<8x4xi32>
    %16 = arith.cmpi eq, %15, %13 : vector<8x4xi32>
    %cst_8 = arith.constant 0.000000e+00 : f32
    %17 = vector.shape_cast %11 : vector<8x1xf32> to vector<8x1xf32>
    %18 = vector.broadcast %17 : vector<8x1xf32> to vector<8x4xf32>
    %19 = vector.broadcast %cst_8 : f32 to vector<8x4xf32>
    %20 = arith.select %16, %18, %19 : vector<8x4xi1>, vector<8x4xf32>
    %cst_9 = arith.constant dense<0.000000e+00> : vector<4xf32>
    %21 = vector.multi_reduction <add>, %20, %cst_9 [0] : vector<8x4xf32> to vector<4xf32>
    %22 = vector.shape_cast %21 : vector<4xf32> to vector<1x4xf32>
    %cst_10 = arith.constant 5.000000e-01 : f32
    %23 = vector.broadcast %cst_10 : f32 to vector<1x4xf32>
    %24 = arith.mulf %22, %23 : vector<1x4xf32>
    %cst_11 = arith.constant dense<0xFF800000> : vector<1xf32>
    %25 = vector.multi_reduction <maximumf>, %24, %cst_11 [1] : vector<1x4xf32> to vector<1xf32>
    %26 = vector.shape_cast %25 : vector<1xf32> to vector<1x1xf32>
    %27 = vector.broadcast %26 : vector<1x1xf32> to vector<1x4xf32>
    %28 = arith.subf %24, %27 : vector<1x4xf32>
    %29 = math.exp %28 : vector<1x4xf32>
    %cst_12 = arith.constant dense<0.000000e+00> : vector<1xf32>
    %30 = vector.multi_reduction <add>, %29, %cst_12 [1] : vector<1x4xf32> to vector<1xf32>
    %31 = vector.shape_cast %30 : vector<1xf32> to vector<1x1xf32>
    %32 = vector.broadcast %31 : vector<1x1xf32> to vector<1x4xf32>
    %33 = arith.divf %29, %32 : vector<1x4xf32>
    %c0_13 = arith.constant 0 : index
    %c0_14 = arith.constant 0 : index
    %34 = vector.load %arg5[%c0_13, %c0_14] : memref<1x4xf32, #tpu.memory_space<vmem>>, vector<1x4xf32>
    tpu.vector_store %arg5[%c0_13, %c0_14], %33 {strides = array<i32>} : memref<1x4xf32, #tpu.memory_space<vmem>>, vector<1x4xf32>,
    %cst_15 = arith.constant 0.000000e+00 : f32
    %35 = vector.shape_cast %33 : vector<1x4xf32> to vector<1x4xf32>
    %36 = vector.broadcast %35 : vector<1x4xf32> to vector<8x4xf32>
    %37 = vector.broadcast %cst_15 : f32 to vector<8x4xf32>
    %38 = arith.select %16, %36, %37 : vector<8x4xi1>, vector<8x4xf32>
    %cst_16 = arith.constant dense<0.000000e+00> : vector<8xf32>
    %39 = vector.multi_reduction <add>, %38, %cst_16 [1] : vector<8x4xf32> to vector<8xf32>
    %40 = vector.shape_cast %39 : vector<8xf32> to vector<8x1xf32>
    %41 = vector.broadcast %40 : vector<8x1xf32> to vector<8x32xf32>
    %42 = arith.mulf %41, %0 : vector<8x32xf32>
    %43 = tpu.iota {dimensions = array<i32: 0>} : vector<2x8xi32>
    %44 = tpu.iota {dimensions = array<i32: 1>} : vector<2x8xi32>
    %c4_i32 = arith.constant 4 : i32
    %45 = vector.broadcast %c4_i32 : i32 to vector<2x8xi32>
    %46 = arith.muli %43, %45 : vector<2x8xi32>
    %47 = arith.cmpi sge, %44, %46 : vector<2x8xi32>
    %c1_i32 = arith.constant 1 : i32
    %48 = vector.broadcast %c1_i32 : i32 to vector<2x8xi32>
    %49 = arith.addi %43, %48 : vector<2x8xi32>
    %c4_i32_17 = arith.constant 4 : i32
    %50 = vector.broadcast %c4_i32_17 : i32 to vector<2x8xi32>
    %51 = arith.muli %49, %50 : vector<2x8xi32>
    %52 = arith.cmpi slt, %44, %51 : vector<2x8xi32>
    %53 = arith.andi %47, %52 : vector<2x8xi1>
    %54 = arith.extui %53 : vector<2x8xi1> to vector<2x8xi32>
    %55 = arith.sitofp %54 : vector<2x8xi32> to vector<2x8xf32>
    %cst_18 = arith.constant dense<0.000000e+00> : vector<2x32xf32>
    %56 = tpu.matmul %55, %42, %cst_18 {dimension_numbers = #tpu.dot_dimension_numbers<[1], [0], [0], [1], [0, 0, 1, 1], [], []>} : vector<2x8xf32>, vector<8x32xf32>, vector<2x32xf32> -> vector<2x32xf32>
    %c0_19 = arith.constant 0 : index
    %c0_20 = arith.constant 0 : index
    %57 = vector.load %arg4[%c0_19, %c0_20] : memref<2x32xf32, #tpu.memory_space<vmem>>, vector<2x32xf32>
    tpu.vector_store %arg4[%c0_19, %c0_20], %56 {strides = array<i32>} : memref<2x32xf32, #tpu.memory_space<vmem>>, vector<2x32xf32>,
    return
  }
}

</mosaic_0001>

<llo_original>
// kernel: tpu_custom_call.1
$region0: #{tpu_custom_call.1}
  #allocation0 [shape = 'u32[]', space=smem, size = 0x4, offset = 0x4, fixed_abs, tag = 'smem constant byte address 0x4 - core index']
  #allocation1 [shape = 'u32[144,128]{1,0:T(1,128)}', space=vmem, size = 0x12000, scoped, tag = 'internal scratch']
  %s0 = inlined_call_operand.hbm [shape: f32[8,32], index: 0, kind: input, shape index: {}]
  %s1 = inlined_call_operand.hbm [shape: f32[32,128], index: 1, kind: input, shape index: {}]
  %s2 = inlined_call_operand.vmem [shape: f32[1,128], index: 2, kind: input, shape index: {}]
  %s3 = inlined_call_operand.vmem [shape: f32[1,128], index: 3, kind: input, shape index: {}]
  %s4 = inlined_call_operand.hbm [shape: f32[2,32], index: 4, kind: output, shape index: {0}]
  %s5 = inlined_call_operand.hbm [shape: f32[1,4], index: 5, kind: output, shape index: {1}]
  %6 = xla_tuple %s4, %s5
  %s7 = sld [smem:[#allocation0]]
  $region42: #{tpu_custom_call.1} parent=0
    _
  %s9 = ssub.s32 1, %s7
  %s10 = scalar_select 0, %s9, %s7
  $region1: #{tpu_custom_call.1} parent=0
    #allocation2 [shape = 'u8[4096]{0}', space=vmem, size = 0x1000, scoped, tag = 'input window, operand 0, single buffered']
    #allocation3 [shape = 's32[1]{0}', space=sflag, size = 0x4, scoped, tag = 'scoped memory for tpu_custom_call.1']
    #allocation4 [shape = 's32[1]{0}', space=sflag, size = 0x4, scoped, tag = 'scoped memory for tpu_custom_call.1']
    #allocation5 [shape = 'u8[16384]{0}', space=vmem, size = 0x4000, scoped, tag = 'input window, operand 1, single buffered']
    #allocation6 [shape = 's32[1]{0}', space=sflag, size = 0x4, scoped, tag = 'scoped memory for tpu_custom_call.1']
    #allocation7 [shape = 'u8[1024]{0}', space=vmem, size = 0x400, scoped, tag = 'output window, operand 0, single buffered']
    #allocation8 [shape = 'u8[512]{0}', space=vmem, size = 0x400, scoped, tag = 'output window, operand 1, single buffered']
    #allocation9 [shape = 's32[1]{0}', space=sflag, size = 0x4, scoped, tag = 'scoped memory for tpu_custom_call.1']
    %11 = vsyncpa [#allocation3], 0
    %12 = vsyncpa [#allocation6], 0
    %13 = vsyncpa [#allocation4], 0
    %14 = vsyncpa [#allocation9], 0
    // Predicated region
    $region2: #{tpu_custom_call.1} parent=1 // pred_check
      _
    $region3: #{tpu_custom_call.1} parent=1 // pred_check_branch
      %16 = sbr.rel (0) target = $region5
    $region4: #{tpu_custom_call.1} parent=1 // pred_region
      %s18 = ssub.s32 128, 128
      %19 = vsyncadd [#allocation3], %s18
      %s21 = sshll.u32 [#allocation2], 4
      %s22 = int_to_ptr.vmem [resolvable:$true] %s21
      %24 = dma.hbm_to_vmem [thread:$0]  %s0, 128, %s22, [#allocation3]
    $region5: #{tpu_custom_call.1} parent=1 // pred_fallthru
      _
    // Predicated region
    $region6: #{tpu_custom_call.1} parent=1 // pred_check
      _
    $region7: #{tpu_custom_call.1} parent=1 // pred_check_branch
      %26 = sbr.rel (0) target = $region9
    $region8: #{tpu_custom_call.1} parent=1 // pred_region
      %s28 = ssub.s32 512, 512
      %29 = vsyncadd [#allocation6], %s28
      %s30 = sshll.u32 [#allocation5], 4
      %s31 = int_to_ptr.vmem [resolvable:$true] %s30
      %36 = dma.hbm_to_vmem [thread:$0]  %s1, 512, %s31, [#allocation6], 128, 128, 8
    $region9: #{tpu_custom_call.1} parent=1 // pred_fallthru
      _
    // Predicated region
    $region10: #{tpu_custom_call.1} parent=1 // pred_check
      _
    $region11: #{tpu_custom_call.1} parent=1 // pred_check_branch
      %38 = sbr.rel (0) target = $region13
    $region12: #{tpu_custom_call.1} parent=1 // pred_region
      _
    $region13: #{tpu_custom_call.1} parent=1 // pred_fallthru
      _
    // Predicated region
    $region14: #{tpu_custom_call.1} parent=1 // pred_check
      _
    $region15: #{tpu_custom_call.1} parent=1 // pred_check_branch
      %40 = sbr.rel (0) target = $region17
    $region16: #{tpu_custom_call.1} parent=1 // pred_region
      _
    $region17: #{tpu_custom_call.1} parent=1 // pred_fallthru
      _
    // Predicated region
    $region18: #{tpu_custom_call.1} parent=1 // pred_check
      _
    $region19: #{tpu_custom_call.1} parent=1 // pred_check_branch
      %42 = sbr.rel (0) target = $region21
    $region20: #{tpu_custom_call.1} parent=1 // pred_region
      %43 = dma.done [#allocation3], 128
    $region21: #{tpu_custom_call.1} parent=1 // pred_fallthru
      _
    // Predicated region
    $region22: #{tpu_custom_call.1} parent=1 // pred_check
      _
    $region23: #{tpu_custom_call.1} parent=1 // pred_check_branch
      %45 = sbr.rel (0) target = $region25
    $region24: #{tpu_custom_call.1} parent=1 // pred_region
      %46 = dma.done [#allocation6], 512
    $region25: #{tpu_custom_call.1} parent=1 // pred_fallthru
      _
    %v47 = vld [vmem:[#allocation2] sm:$0xff]
    %v48 = vld [vmem:[#allocation5] sm:$0xff]
    %v49 = vld [vmem:[#allocation5 + $0x8] sm:$0xff]
    %v50 = vld [vmem:[#allocation5 + $0x10] sm:$0xff]
    %v51 = vld [vmem:[#allocation5 + $0x18] sm:$0xff]
    %v52 = vld [vmem:[%s2] sm:$0x1]
    %v54 = vlaneseq
    %v55 = vshrl.u32 %v54, 7
    %v56 = vsub.s32 0, %v55
    %v57 = vrot.slane %v52, %v56
    %vm59 = vcmask 261120
    %v61 = vsel %vm59, %v47, 0
    %63 = vmatprep.subr.mxu0 0.0
    %64 = vmatpush1.msra.mxu0 %v48
    %65 = vmatprep.subr.mxu0 0.0
    %66 = vmatpush1.msra.mxu0 %v49
    %67 = vmatprep.subr.mxu0 0.0
    %68 = vmatpush1.msra.mxu0 %v50
    %69 = vmatprep.subr.mxu0 0.0
    %70 = vmatpush1.msra.mxu0 %v51
    %71 = vmatprep.subr.mxu0 0.0
    %72 = vmatpush1.msra.mxu0 0.0
    %73 = vmatprep.subr.mxu0 0.0
    %74 = vmatpush1.msra.mxu0 0.0
    %75 = vmatprep.subr.mxu0 0.0
    %76 = vmatpush1.msra.mxu0 0.0
    %77 = vmatprep.subr.mxu0 0.0
    %78 = vmatpush1.msra.mxu0 0.0
    %79 = vmatprep.subr.mxu0 0.0
    %80 = vmatpush1.msra.mxu0 0.0
    %81 = vmatprep.subr.mxu0 0.0
    %82 = vmatpush1.msra.mxu0 0.0
    %83 = vmatprep.subr.mxu0 0.0
    %84 = vmatpush1.msra.mxu0 0.0
    %85 = vmatprep.subr.mxu0 0.0
    %86 = vmatpush1.msra.mxu0 0.0
    %87 = vmatprep.subr.mxu0 0.0
    %88 = vmatpush1.msra.mxu0 0.0
    %89 = vmatprep.subr.mxu0 0.0
    %90 = vmatpush1.msra.mxu0 0.0
    %91 = vmatprep.subr.mxu0 0.0
    %92 = vmatpush1.msra.mxu0 0.0
    %93 = vmatprep.subr.mxu0 0.0
    %94 = vmatpush1.msra.mxu0 0.0
    %95 = vmatprep.subr.mxu0 0.0
    %96 = vmatpush1.msra.mxu0 0.0
    %97 = vmatprep.subr.mxu0 0.0
    %98 = vmatpush1.msra.mxu0 0.0
    %99 = vmatprep.subr.mxu0 0.0
    %100 = vmatpush1.msra.mxu0 0.0
    %101 = vmatprep.subr.mxu0 0.0
    %102 = vmatpush1.msra.mxu0 0.0
    %103 = vmatprep.subr.mxu0 0.0
    %104 = vmatpush1.msra.mxu0 0.0
    %105 = vmatprep.subr.mxu0 0.0
    %106 = vmatpush1.msra.mxu0 0.0
    %107 = vmatprep.subr.mxu0 0.0
    %108 = vmatpush1.msra.mxu0 0.0
    %109 = vmatprep.subr.mxu0 0.0
    %110 = vmatpush1.msra.mxu0 0.0
    %111 = vmatprep.subr.mxu0 0.0
    %112 = vmatpush1.msra.mxu0 0.0
    %113 = vmatprep.subr.mxu0 0.0
    %114 = vmatpush1.msra.mxu0 0.0
    %115 = vmatprep.subr.mxu0 0.0
    %116 = vmatpush1.msra.mxu0 0.0
    %117 = vmatprep.subr.mxu0 0.0
    %118 = vmatpush1.msra.mxu0 0.0
    %119 = vmatprep.subr.mxu0 0.0
    %120 = vmatpush1.msra.mxu0 0.0
    %121 = vmatprep.subr.mxu0 0.0
    %122 = vmatpush1.msra.mxu0 0.0
    %123 = vmatprep.subr.mxu0 0.0
    %124 = vmatpush1.msra.mxu0 0.0
    %125 = vmatprep.subr.mxu0 0.0
    %126 = vmatpush1.msra.mxu0 0.0
    %127 = vmatprep.mubr.f32.mxu0 0.0
    %128 = vmatmul.mubr.f32.gmra.mrb[0].mxu0 %v61
    %v129 = vpop.f32.mrb[0].mxu0
    %v130 = vadd.f32 %v57, %v129
    %v131 = vpop.f32.mrb[0].mxu0
    %132 = vdwg.mxu0
    %v133 = vtanh.pop %v130
    %v134 = vld [vmem:[%s3] sm:$0x1]
    %v136 = vlaneseq
    %v137 = vshrl.u32 %v136, 7
    %v138 = vsub.s32 0, %v137
    %v139 = vrot.slane %v134, %v138
    %v141 = vmul.f32 %v133, %v139
    %142 = vadd.xlane.f32.xlu0 %v141
    %v143 = vpop.xlane.xlu0 %142
    %v144 = vlaneseq
    %v145 = vshrl.u32 %v144, 7
    %v146 = vlaneseq
    %v147 = vand.u32 %v146, 127
    %v148 = vand.u32 %v145, 3
    %vm149 = vcmp.eq.s32.totalorder %v148, %v147
    %v150 = vsel %vm149, %v143, 0.0
    %vm151 = vcmask 31744
    %v152 = vsel %vm151, %v150, 0.0
    %v153 = vrot.slane %v152, 4
    %v154 = vadd.f32 %v152, %v153
    %v155 = vrot.slane %v154, 2
    %v156 = vadd.f32 %v154, %v155
    %v157 = vrot.slane %v156, 1
    %v158 = vadd.f32 %v156, %v157
    %v159 = vmul.f32 %v158, 0.5
    %v160 = vsel %vm151, %v159, -inf
    %161 = vmax.xlane.f32.xlu0 %v160
    %v162 = vpop.xlane.xlu0 %161
    %v163 = vsub.f32 %v159, %v162
    %v164 = vmul.f32 %v163, 1.442695
    %v165 = vpow.pop %v164
    %v166 = vsel %vm151, %v165, 0.0
    %167 = vadd.xlane.f32.xlu0 %v166
    %v168 = vpop.xlane.xlu0 %167
    %v169 = vrcp.pop %v168
    %v170 = vmul.f32 %v165, %v169
    %vm171 = vcmask 24576
    %172 = vst.msk [vmem:[#allocation8] sm:$0x1] %vm171, %v170
    %v173 = vsel %vm149, %v170, 0.0
    %v174 = vsel %vm151, %v173, 0.0
    %175 = vadd.xlane.f32.xlu0 %v174
    %v176 = vpop.xlane.xlu0 %175
    %v177 = vmul.f32 %v176, %v47
    %v178 = vmul.u32 %v145, 4
    %vm179 = vcmp.ge.s32.totalorder %v147, %v178
    %v180 = vadd.s32 %v145, 1
    %v181 = vmul.u32 %v180, 4
    %vm182 = vcmp.lt.s32.totalorder %v147, %v181
    %vm183 = vmand %vm179, %vm182
    %v184 = vsel %vm183, 1, 0
    %v185 = vcvt.s32.f32 %v184
    %vm186 = vcmask 64512
    %v188 = vsel %vm186, %v185, 0
    %190 = vmatprep.subr.mxu0 0.0
    %191 = vmatpush1.msra.mxu0 %v177
    %192 = vmatprep.subr.mxu0 0.0
    %193 = vmatpush1.msra.mxu0 0.0
    %194 = vmatprep.subr.mxu0 0.0
    %195 = vmatpush1.msra.mxu0 0.0
    %196 = vmatprep.subr.mxu0 0.0
    %197 = vmatpush1.msra.mxu0 0.0
    %198 = vmatprep.subr.mxu0 0.0
    %199 = vmatpush1.msra.mxu0 0.0
    %200 = vmatprep.subr.mxu0 0.0
    %201 = vmatpush1.msra.mxu0 0.0
    %202 = vmatprep.subr.mxu0 0.0
    %203 = vmatpush1.msra.mxu0 0.0
    %204 = vmatprep.subr.mxu0 0.0
    %205 = vmatpush1.msra.mxu0 0.0
    %206 = vmatprep.subr.mxu0 0.0
    %207 = vmatpush1.msra.mxu0 0.0
    %208 = vmatprep.subr.mxu0 0.0
    %209 = vmatpush1.msra.mxu0 0.0
    %210 = vmatprep.subr.mxu0 0.0
    %211 = vmatpush1.msra.mxu0 0.0
    %212 = vmatprep.subr.mxu0 0.0
    %213 = vmatpush1.msra.mxu0 0.0
    %214 = vmatprep.subr.mxu0 0.0
    %215 = vmatpush1.msra.mxu0 0.0
    %216 = vmatprep.subr.mxu0 0.0
    %217 = vmatpush1.msra.mxu0 0.0
    %218 = vmatprep.subr.mxu0 0.0
    %219 = vmatpush1.msra.mxu0 0.0
    %220 = vmatprep.subr.mxu0 0.0
    %221 = vmatpush1.msra.mxu0 0.0
    %222 = vmatprep.subr.mxu0 0.0
    %223 = vmatpush1.msra.mxu0 0.0
    %224 = vmatprep.subr.mxu0 0.0
    %225 = vmatpush1.msra.mxu0 0.0
    %226 = vmatprep.subr.mxu0 0.0
    %227 = vmatpush1.msra.mxu0 0.0
    %228 = vmatprep.subr.mxu0 0.0
    %229 = vmatpush1.msra.mxu0 0.0
    %230 = vmatprep.subr.mxu0 0.0
    %231 = vmatpush1.msra.mxu0 0.0
    %232 = vmatprep.subr.mxu0 0.0
    %233 = vmatpush1.msra.mxu0 0.0
    %234 = vmatprep.subr.mxu0 0.0
    %235 = vmatpush1.msra.mxu0 0.0
    %236 = vmatprep.subr.mxu0 0.0
    %237 = vmatpush1.msra.mxu0 0.0
    %238 = vmatprep.subr.mxu0 0.0
    %239 = vmatpush1.msra.mxu0 0.0
    %240 = vmatprep.subr.mxu0 0.0
    %241 = vmatpush1.msra.mxu0 0.0
    %242 = vmatprep.subr.mxu0 0.0
    %243 = vmatpush1.msra.mxu0 0.0
    %244 = vmatprep.subr.mxu0 0.0
    %245 = vmatpush1.msra.mxu0 0.0
    %246 = vmatprep.subr.mxu0 0.0
    %247 = vmatpush1.msra.mxu0 0.0
    %248 = vmatprep.subr.mxu0 0.0
    %249 = vmatpush1.msra.mxu0 0.0
    %250 = vmatprep.subr.mxu0 0.0
    %251 = vmatpush1.msra.mxu0 0.0
    %252 = vmatprep.subr.mxu0 0.0
    %253 = vmatpush1.msra.mxu0 0.0
    %254 = vmatprep.mubr.f32.mxu0 0.0
    %255 = vmatmul.mubr.f32.gmra.mrb[0].mxu0 %v188
    %v256 = vpop.f32.mrb[0].mxu0
    %v257 = vadd.f32 0.0, %v256
    %v258 = vpop.f32.mrb[0].mxu0
    %259 = vdwg.mxu0
    %vm260 = vcmask 254976
    %261 = vst.msk [vmem:[#allocation7] sm:$0x3] %vm260, %v257
    // Predicated region
    $region26: #{tpu_custom_call.1} parent=1 // pred_check
      _
    $region27: #{tpu_custom_call.1} parent=1 // pred_check_branch
      %263 = sbr.rel (0) target = $region29
    $region28: #{tpu_custom_call.1} parent=1 // pred_region
      %s265 = ssub.s32 32, 32
      %266 = vsyncadd [#allocation4], %s265
      %s268 = sshll.u32 [#allocation7], 4
      %s269 = int_to_ptr.vmem [resolvable:$true] %s268
      %271 = dma.vmem_to_hbm [thread:$0]  %s269, 32, %s4, [#allocation4]
    $region29: #{tpu_custom_call.1} parent=1 // pred_fallthru
      _
    // Predicated region
    $region30: #{tpu_custom_call.1} parent=1 // pred_check
      _
    $region31: #{tpu_custom_call.1} parent=1 // pred_check_branch
      %273 = sbr.rel (0) target = $region33
    $region32: #{tpu_custom_call.1} parent=1 // pred_region
      %s275 = ssub.s32 16, 16
      %276 = vsyncadd [#allocation9], %s275
      %s278 = sshll.u32 [#allocation8], 4
      %s279 = int_to_ptr.vmem [resolvable:$true] %s278
      %281 = dma.vmem_to_hbm [thread:$0]  %s279, 16, %s5, [#allocation9]
    $region33: #{tpu_custom_call.1} parent=1 // pred_fallthru
      _
    // Predicated region
    $region34: #{tpu_custom_call.1} parent=1 // pred_check
      _
    $region35: #{tpu_custom_call.1} parent=1 // pred_check_branch
      %283 = sbr.rel (0) target = $region37
    $region36: #{tpu_custom_call.1} parent=1 // pred_region
      %284 = dma.done [#allocation4], 32
    $region37: #{tpu_custom_call.1} parent=1 // pred_fallthru
      _
    // Predicated region
    $region38: #{tpu_custom_call.1} parent=1 // pred_check
      _
    $region39: #{tpu_custom_call.1} parent=1 // pred_check_branch
      %286 = sbr.rel (0) target = $region41
    $region40: #{tpu_custom_call.1} parent=1 // pred_region
      %287 = dma.done [#allocation9], 16
    $region41: #{tpu_custom_call.1} parent=1 // pred_fallthru
      _
    %288 = vsyncpa [#allocation3], 1
    %289 = vsyncpa [#allocation6], 1
    %290 = vsyncpa [#allocation4], 1
    %291 = vsyncpa [#allocation9], 1

</llo_original>
